<compile_context>
chip_gen: v5e
topology: v5e:2x2
jax: 0.10.0
libtpu: 0.0.40
codegen_flags: <defaults>
</compile_context>

<pallas_src>
import functools

import jax
import jax.numpy as jnp
from jax.experimental import pallas as pl
from jax.experimental.pallas import tpu as pltpu


# ----------------------------- helpers -------------------------------------


def _cdiv(a, b):
    return -(-a // b)


def _round_up(x, m):
    return _cdiv(x, m) * m


def _sublane(dtype):
    """Sublane granularity for the second-minor dim: 8 (f32), 16 (bf16), 32 (i8)."""
    itemsize = jnp.dtype(dtype).itemsize
    return max(8, 32 // max(itemsize, 1))


def _supports_buffered():
    if getattr(pl, "Buffered", None) is None:
        return False
    try:
        pl.BlockSpec((8, 128), lambda i: (0, 0), pipeline_mode=pl.Buffered(1))
        return True
    except TypeError:
        return False


def _weight_spec(shape):
    """Grid-constant weight block: same block every step, so single-buffer it."""
    if _supports_buffered():
        return pl.BlockSpec(shape, lambda i: (0, 0), pipeline_mode=pl.Buffered(1))
    return pl.BlockSpec(shape, lambda i: (0, 0))


def _vmem_budget_bytes():
    """Scoped VMEM budget with headroom: ~54 MiB on v7x, ~108 MiB on v5e/v6e."""
    try:
        cap = int(pltpu.get_tpu_info().vmem_capacity_bytes)
        if cap <= 0:
            cap = 128 << 20
    except Exception:
        cap = 128 << 20
    return min(int(cap * 0.85), 110 << 20)


def _num_tensorcores():
    """2 TensorCores per device on v7x (and megacore v4/v5p), else 1."""
    try:
        kind = jax.devices()[0].device_kind.lower()
    except Exception:
        return 1
    if "v7" in kind or "v4" in kind or "v5p" in kind:
        return 2
    return 1


def _choose_chunks(batch_tile, sublane):
    """Split the batch tile into independent row chunks so MXU (matmul) of one
    chunk overlaps EUP (tanh) of the next."""
    k = batch_tile // sublane
    if k >= 4 and k % 4 == 0:
        n = 4
    elif k >= 2 and k % 2 == 0:
        n = 2
    else:
        n = 1
    return n, batch_tile // n


def _choose_batch_tile(batch, h_pad, x_itemsize, w_bytes, sublane, num_cores, budget):
    """Bandwidth-, VMEM- and core-count-aware batch tile."""
    b = _round_up(batch, sublane)
    # VMEM cap: weights + biases + double-buffered h/out tiles must fit.
    per_row = 2 * 2 * h_pad * x_itemsize
    avail = budget - w_bytes - 4 * h_pad * 4 - (4 << 20)
    if avail > per_row * sublane:
        cap_rows = max(sublane, (avail // per_row) // sublane * sublane)
    else:
        cap_rows = sublane
    # ~2 MiB of h per grid step amortizes the ~0.35us per-step overhead; don't
    # force >1 step on single-core chips when the whole batch fits.
    bw_rows = max(sublane, _round_up((2 << 20) // max(1, h_pad * x_itemsize), sublane))
    tile = max(sublane, min(b, bw_rows, cap_rows))
    if num_cores > 1:
        # Balanced, even number of tiles so "parallel" splits evenly across TCs.
        n_tiles = _round_up(max(_cdiv(b, tile), num_cores), num_cores)
        tile = max(sublane, min(_round_up(_cdiv(b, n_tiles), sublane), cap_rows))
    return tile


# ------------------------------ kernel -------------------------------------


def odefunc_kernel(h_ref, w1_ref, b1_ref, w2_ref, b2_ref, out_ref, *,
                   n_chunks, chunk_rows):
    """out = tanh(h @ W1t + b1) @ W2t + b2, weights already in [in, out] layout."""
    w1 = w1_ref[...]
    w2 = w2_ref[...]
    b1 = b1_ref[...]
    b2 = b2_ref[...]
    compute_dtype = w1.dtype
    # Statically unrolled chunks: independent rows let the LLO scheduler overlap
    # the MXU matmuls of one chunk with the EUP tanh of another.
    for c in range(n_chunks):
        r0 = c * chunk_rows
        h = h_ref[pl.ds(r0, chunk_rows), :]
        if h.dtype != compute_dtype:
            h = h.astype(compute_dtype)
        z1 = jnp.dot(h, w1, preferred_element_type=jnp.float32)
        a1 = jnp.tanh(z1 + b1).astype(compute_dtype)  # tanh in f32 on the EUP
        z2 = jnp.dot(a1, w2, preferred_element_type=jnp.float32)
        out_ref[pl.ds(r0, chunk_rows), :] = (z2 + b2).astype(out_ref.dtype)


# ------------------------------ wrappers ------------------------------------


def prepare_odefunc_params(w1, b1, w2, b2, *, param_dtype=None):
    """One-time parameter prep (call OUTSIDE the ODE-solver loop):
      * zero-pad hidden dim to a multiple of 128 (lane-dense, exact for
        Linear->Tanh->Linear),
      * pre-transpose weights to [in, out] so the kernel is a plain x @ W,
      * optionally cast weights to bf16 (param_dtype) for full MXU rate.
    """
    hidden = w1.shape[0]
    h_pad = _round_up(max(hidden, 128), 128)
    if h_pad != hidden:
        pad = h_pad - hidden
        w1 = jnp.pad(w1, ((0, pad), (0, pad)))
        w2 = jnp.pad(w2, ((0, pad), (0, pad)))
        b1 = jnp.pad(b1, (0, pad))
        b2 = jnp.pad(b2, (0, pad))
    w1t = jnp.asarray(w1).T  # [in, out] — transpose paid once, not per f-eval
    w2t = jnp.asarray(w2).T
    if param_dtype is not None:
        w1t = w1t.astype(param_dtype)
        w2t = w2t.astype(param_dtype)
    b1 = jnp.asarray(b1).reshape(1, h_pad).astype(jnp.float32)
    b2 = jnp.asarray(b2).reshape(1, h_pad).astype(jnp.float32)
    return (w1t, b1, w2t, b2, hidden)


def default_batch_tile(batch, x_dtype, prepared):
    w1t = prepared[0]
    h_pad = w1t.shape[0]
    x_itemsize = jnp.dtype(x_dtype).itemsize
    w_itemsize = jnp.dtype(w1t.dtype).itemsize
    w_factor = 1 if _supports_buffered() else 2
    w_bytes = w_factor * 2 * h_pad * h_pad * w_itemsize
    return _choose_batch_tile(batch, h_pad, x_itemsize, w_bytes,
                              _sublane(x_dtype), _num_tensorcores(),
                              _vmem_budget_bytes())


def _odefunc_call(h_p, w1t, b1, w2t, b2, batch_tile):
    """Pallas call on an already-padded state [b_pad, h_pad], b_pad % tile == 0."""
    b_pad, h_pad = h_p.shape
    assert b_pad % batch_tile == 0
    x_itemsize = jnp.dtype(h_p.dtype).itemsize
    w_itemsize = jnp.dtype(w1t.dtype).itemsize
    sublane = _sublane(h_p.dtype)
    n_chunks, chunk_rows = _choose_chunks(batch_tile, sublane)

    w_factor = 1 if _supports_buffered() else 2
    vmem_need = (w_factor * 2 * h_pad * h_pad * w_itemsize
                 + 2 * 2 * batch_tile * h_pad * x_itemsize
                 + 2 * 2 * h_pad * 4
                 + (2 << 20))  # Mosaic internal scratch margin
    budget = _vmem_budget_bytes()
    vmem_limit = min(max(int(vmem_need * 1.25), 16 << 20), budget)
    # TODO(synk): if weights alone exceed the VMEM budget (very large hidden,
    # esp. v7x's 64 MiB), add an output-feature grid axis tiling W1/W2.

    cost = pl.CostEstimate(
        flops=4 * b_pad * h_pad * h_pad,          # two matmuls: 2*M*N*K each
        transcendentals=b_pad * h_pad,            # tanh
        bytes_accessed=(2 * b_pad * h_pad * x_itemsize
                        + 2 * h_pad * h_pad * w_itemsize
                        + 2 * h_pad * 4),
    )

    kernel = functools.partial(odefunc_kernel, n_chunks=n_chunks,
                               chunk_rows=chunk_rows)
    return pl.pallas_call(
        kernel,
        out_shape=jax.ShapeDtypeStruct((b_pad, h_pad), h_p.dtype),
        grid_spec=pltpu.PrefetchScalarGridSpec(
            num_scalar_prefetch=0,
            grid=(b_pad // batch_tile,),
            in_specs=[
                pl.BlockSpec((batch_tile, h_pad), lambda i: (i, 0)),  # h tile
                _weight_spec((h_pad, h_pad)),                         # W1t (const)
                pl.BlockSpec((1, h_pad), lambda i: (0, 0)),           # b1
                _weight_spec((h_pad, h_pad)),                         # W2t (const)
                pl.BlockSpec((1, h_pad), lambda i: (0, 0)),           # b2
            ],
            out_specs=pl.BlockSpec((batch_tile, h_pad), lambda i: (i, 0)),
        ),
        compiler_params=pltpu.CompilerParams(
            dimension_semantics=("parallel",),
            vmem_limit_bytes=vmem_limit,
        ),
        cost_estimate=cost,
    )(h_p, w1t, b1, w2t, b2)


# -------- padded-state API (hoist pad/slice out of the solver loop) ---------


def pad_state(h, prepared, *, batch_tile=None):
    """Pad the ODE state ONCE before integration.  Returns (h_padded, info)."""
    w1t, _, _, _, hidden = prepared
    batch, h_in = h.shape
    assert h_in == hidden, "hidden size mismatch with prepared params"
    h_pad = w1t.shape[0]
    if batch_tile is None:
        batch_tile = default_batch_tile(batch, h.dtype, prepared)
    else:
        batch_tile = _round_up(batch_tile, _sublane(h.dtype))
    b_pad = _round_up(batch, batch_tile)
    h_p = h
    if b_pad != batch or h_pad != h_in:
        h_p = jnp.pad(h, ((0, b_pad - batch), (0, h_pad - h_in)))
    return h_p, (batch, hidden, batch_tile)


def odefunc_forward_padded(t, h_padded, prepared, info):
    """f-evaluation on the padded state; no per-eval pad/slice HBM round trips."""
    del t  # ODEFunc.forward ignores t
    w1t, b1, w2t, b2, _ = prepared
    _, _, batch_tile = info
    return _odefunc_call(h_padded, w1t, b1, w2t, b2, batch_tile)


def unpad_state(h_padded, info):
    batch, hidden, _ = info
    return h_padded[:batch, :hidden]


# ----------------------------- drop-in paths --------------------------------


def odefunc_forward_prepared(t, h, prepared, *, batch_tile=None):
    """Drop-in Pallas forward of ODEFunc (pads and slices around the call)."""
    h_p, info = pad_state(h, prepared, batch_tile=batch_tile)
    out_p = odefunc_forward_padded(t, h_p, prepared, info)
    return unpad_state(out_p, info)


def odefunc_forward(t, h, w1, b1, w2, b2, *, batch_tile=None, param_dtype=None):
    """Convenience wrapper.  When driving an ODE solver, call
    prepare_odefunc_params()/pad_state() once outside the loop instead."""
    prepared = prepare_odefunc_params(w1, b1, w2, b2, param_dtype=param_dtype)
    return odefunc_forward_prepared(t, h, prepared, batch_tile=batch_tile)


# --------------------------- reference & init -------------------------------


def init_odefunc_params(key, hidden_dim, dtype=jnp.float32):
    """Mimics nn.Linear's uniform(-1/sqrt(fan_in), 1/sqrt(fan_in)) init."""
    k1, k2, k3, k4 = jax.random.split(key, 4)
    bound = 1.0 / (hidden_dim ** 0.5)
    w1 = jax.random.uniform(k1, (hidden_dim, hidden_dim), dtype, -bound, bound)
    b1 = jax.random.uniform(k2, (hidden_dim,), dtype, -bound, bound)
    w2 = jax.random.uniform(k3, (hidden_dim, hidden_dim), dtype, -bound, bound)
    b2 = jax.random.uniform(k4, (hidden_dim,), dtype, -bound, bound)
    return w1, b1, w2, b2


def odefunc_reference(t, h, w1, b1, w2, b2):
    """Pure-JAX reference matching PyTorch: Linear -> Tanh -> Linear."""
    del t
    return jnp.tanh(h @ w1.T + b1) @ w2.T + b2


# ------------------------------- demo ---------------------------------------


if __name__ == "__main__":
    key = jax.random.PRNGKey(0)
    k_params, k_h, k_h2 = jax.random.split(key, 3)

    hidden_dim = 32
    batch = 8

    w1, b1, w2, b2 = init_odefunc_params(k_params, hidden_dim)
    t = jnp.float32(0.0)  # unused by ODEFunc.forward

    prepared = prepare_odefunc_params(w1, b1, w2, b2)

    # 1) Small batch, drop-in path.
    h = jax.random.normal(k_h, (batch, hidden_dim), jnp.float32)
    out = jax.block_until_ready(odefunc_forward_prepared(t, h, prepared))
    ref = odefunc_reference(t, h, w1, b1, w2, b2)
    assert out.shape == (batch, hidden_dim)
    assert jnp.allclose(out, ref, atol=1e-5, rtol=1e-5), "mismatch (small batch)"

    # 2) Larger batch with an explicit multi-step grid: exercises the pipelined
    #    grid path and the in-kernel row chunking (32-row tile -> 4 chunks).
    h2 = jax.random.normal(k_h2, (64, hidden_dim), jnp.float32)
    out2 = jax.block_until_ready(
        odefunc_forward_prepared(t, h2, prepared, batch_tile=32))
    ref2 = odefunc_reference(t, h2, w1, b1, w2, b2)
    assert out2.shape == (64, hidden_dim)
    assert jnp.allclose(out2, ref2, atol=1e-5, rtol=1e-5), "mismatch (tiled batch)"

    # 3) Padded-state path: pad once, two chained f-evaluations, slice once
    #    (how a solver loop should drive the kernel).
    h_p, info = pad_state(h2, prepared)
    y_p = odefunc_forward_padded(t, h_p, prepared, info)
    y_p = odefunc_forward_padded(t, y_p, prepared, info)
    y = jax.block_until_ready(unpad_state(y_p, info))
    ref3 = odefunc_reference(t, ref2, w1, b1, w2, b2)
    assert jnp.allclose(y, ref3, atol=1e-4, rtol=1e-4), "mismatch (padded state)"

    # 4) bf16-weight path (full MXU rate), loose tolerance vs the f32 reference.
    prepared_bf16 = prepare_odefunc_params(w1, b1, w2, b2,
                                           param_dtype=jnp.bfloat16)
    out_bf = jax.block_until_ready(odefunc_forward_prepared(t, h2, prepared_bf16))
    assert jnp.allclose(out_bf.astype(jnp.float32), ref2, atol=5e-2, rtol=5e-2), \
        "mismatch (bf16 weights)"

    print("KERNEL_OK")
</pallas_src>

<mosaic_0001>
module attributes {stable_mosaic.version = 11 : i64} {
  func.func @odefunc_kernel(%arg0: i32, %arg1: memref<8x128xf32, #tpu.memory_space<vmem>>, %arg2: memref<128x128xf32, #tpu.memory_space<vmem>>, %arg3: memref<1x128xf32, #tpu.memory_space<vmem>>, %arg4: memref<128x128xf32, #tpu.memory_space<vmem>>, %arg5: memref<1x128xf32, #tpu.memory_space<vmem>>, %arg6: memref<8x128xf32, #tpu.memory_space<vmem>>) attributes {dimension_semantics = [#tpu.dimension_semantics<parallel>], iteration_bounds = array<i64: 1>, scalar_prefetch = 0 : i64, scratch_operands = 0 : i64, tpu.core_type = #tpu.core_type<tc>, window_params = [{transform_indices = @transform_0, window_bounds = array<i64: 8, 128>}, {pipeline_mode = #tpu.pipeline_mode<synchronous>, transform_indices = @transform_1, window_bounds = array<i64: 128, 128>}, {pipeline_mode = #tpu.pipeline_mode<synchronous>, transform_indices = @transform_2, window_bounds = array<i64: 1, 128>}, {pipeline_mode = #tpu.pipeline_mode<synchronous>, transform_indices = @transform_3, window_bounds = array<i64: 128, 128>}, {pipeline_mode = #tpu.pipeline_mode<synchronous>, transform_indices = @transform_4, window_bounds = array<i64: 1, 128>}, {transform_indices = @transform_5, window_bounds = array<i64: 8, 128>}]} {
    %c0 = arith.constant 0 : index
    %c0_0 = arith.constant 0 : index
    %0 = vector.load %arg2[%c0, %c0_0] : memref<128x128xf32, #tpu.memory_space<vmem>>, vector<128x128xf32>
    %c0_1 = arith.constant 0 : index
    %c0_2 = arith.constant 0 : index
    %1 = vector.load %arg4[%c0_1, %c0_2] : memref<128x128xf32, #tpu.memory_space<vmem>>, vector<128x128xf32>
    %c0_3 = arith.constant 0 : index
    %c0_4 = arith.constant 0 : index
    %2 = vector.load %arg3[%c0_3, %c0_4] : memref<1x128xf32, #tpu.memory_space<vmem>>, vector<1x128xf32>
    %c0_5 = arith.constant 0 : index
    %c0_6 = arith.constant 0 : index
    %3 = vector.load %arg5[%c0_5, %c0_6] : memref<1x128xf32, #tpu.memory_space<vmem>>, vector<1x128xf32>
    %c0_7 = arith.constant 0 : index
    %c0_8 = arith.constant 0 : index
    %4 = vector.load %arg1[%c0_7, %c0_8] : memref<8x128xf32, #tpu.memory_space<vmem>>, vector<8x128xf32>
    %cst = arith.constant dense<0.000000e+00> : vector<8x128xf32>
    %5 = tpu.matmul %4, %0, %cst {dimension_numbers = #tpu.dot_dimension_numbers<[1], [0], [0], [1], [0, 0, 1, 1], [], []>} : vector<8x128xf32>, vector<128x128xf32>, vector<8x128xf32> -> vector<8x128xf32>
    %6 = vector.broadcast %2 : vector<1x128xf32> to vector<8x128xf32>
    %7 = arith.addf %5, %6 : vector<8x128xf32>
    %8 = math.tanh %7 : vector<8x128xf32>
    %cst_9 = arith.constant dense<0.000000e+00> : vector<8x128xf32>
    %9 = tpu.matmul %8, %1, %cst_9 {dimension_numbers = #tpu.dot_dimension_numbers<[1], [0], [0], [1], [0, 0, 1, 1], [], []>} : vector<8x128xf32>, vector<128x128xf32>, vector<8x128xf32> -> vector<8x128xf32>
    %10 = vector.broadcast %3 : vector<1x128xf32> to vector<8x128xf32>
    %11 = arith.addf %9, %10 : vector<8x128xf32>
    %c0_10 = arith.constant 0 : index
    %c0_11 = arith.constant 0 : index
    %12 = vector.load %arg6[%c0_10, %c0_11] : memref<8x128xf32, #tpu.memory_space<vmem>>, vector<8x128xf32>
    tpu.vector_store %arg6[%c0_10, %c0_11], %11 {strides = array<i32>} : memref<8x128xf32, #tpu.memory_space<vmem>>, vector<8x128xf32>,
    return
  }
  func.func @transform_0(%arg0: i32) -> (i32, i32) {
    %c0_i32 = arith.constant 0 : i32
    %c0_i32_0 = arith.constant 0 : i32
    return %arg0, %c0_i32 : i32, i32
  }
  func.func @transform_1(%arg0: i32) -> (i32, i32) {
    %c0_i32 = arith.constant 0 : i32
    %c0_i32_0 = arith.constant 0 : i32
    %c0_i32_1 = arith.constant 0 : i32
    return %c0_i32, %c0_i32_0 : i32, i32
  }
  func.func @transform_2(%arg0: i32) -> (i32, i32) {
    %c0_i32 = arith.constant 0 : i32
    %c0_i32_0 = arith.constant 0 : i32
    %c0_i32_1 = arith.constant 0 : i32
    return %c0_i32, %c0_i32_0 : i32, i32
  }
  func.func @transform_3(%arg0: i32) -> (i32, i32) {
    %c0_i32 = arith.constant 0 : i32
    %c0_i32_0 = arith.constant 0 : i32
    %c0_i32_1 = arith.constant 0 : i32
    return %c0_i32, %c0_i32_0 : i32, i32
  }
  func.func @transform_4(%arg0: i32) -> (i32, i32) {
    %c0_i32 = arith.constant 0 : i32
    %c0_i32_0 = arith.constant 0 : i32
    %c0_i32_1 = arith.constant 0 : i32
    return %c0_i32, %c0_i32_0 : i32, i32
  }
  func.func @transform_5(%arg0: i32) -> (i32, i32) {
    %c0_i32 = arith.constant 0 : i32
    %c0_i32_0 = arith.constant 0 : i32
    return %arg0, %c0_i32 : i32, i32
  }
}

</mosaic_0001>

<llo_original>
// kernel: tpu_custom_call.1
$region0: #{tpu_custom_call.1}
  #allocation0 [shape = 'u32[]', space=smem, size = 0x4, offset = 0x4, fixed_abs, tag = 'smem constant byte address 0x4 - core index']
  #allocation1 [shape = 'u32[72,128]{1,0:T(1,128)}', space=vmem, size = 0x9000, scoped, tag = 'internal scratch']
  %s0 = inlined_call_operand.hbm [shape: f32[8,128], index: 0, kind: input, shape index: {}]
  %s1 = inlined_call_operand.hbm [shape: f32[128,128], index: 1, kind: input, shape index: {}]
  %s2 = inlined_call_operand.vmem [shape: f32[1,128], index: 2, kind: input, shape index: {}]
  %s3 = inlined_call_operand.hbm [shape: f32[128,128], index: 3, kind: input, shape index: {}]
  %s4 = inlined_call_operand.vmem [shape: f32[1,128], index: 4, kind: input, shape index: {}]
  %s5 = inlined_call_operand.hbm [shape: f32[8,128], index: 5, kind: output, shape index: {}]
  %s6 = sld [smem:[#allocation0]]
  $region42: #{tpu_custom_call.1} parent=0
    _
  %s8 = ssub.s32 1, %s6
  %s9 = scalar_select 0, %s8, %s6
  $region1: #{tpu_custom_call.1} parent=0
    #allocation2 [shape = 'u8[4096]{0}', space=vmem, size = 0x1000, scoped, tag = 'input window, operand 0, single buffered']
    #allocation3 [shape = 's32[1]{0}', space=sflag, size = 0x4, scoped, tag = 'scoped memory for tpu_custom_call.1']
    #allocation4 [shape = 's32[1]{0}', space=sflag, size = 0x4, scoped, tag = 'scoped memory for tpu_custom_call.1']
    #allocation5 [shape = 'u8[65536]{0}', space=vmem, size = 0x10000, scoped, tag = 'input window, operand 1, single buffered']
    #allocation6 [shape = 's32[1]{0}', space=sflag, size = 0x4, scoped, tag = 'scoped memory for tpu_custom_call.1']
    #allocation7 [shape = 'u8[65536]{0}', space=vmem, size = 0x10000, scoped, tag = 'input window, operand 3, single buffered']
    #allocation8 [shape = 'u8[4096]{0}', space=vmem, size = 0x1000, scoped, tag = 'output window, operand 0, single buffered']
    %10 = vsyncpa [#allocation3], 0
    %11 = vsyncpa [#allocation6], 0
    %12 = vsyncpa [#allocation4], 0
    // Predicated region
    $region2: #{tpu_custom_call.1} parent=1 // pred_check
      _
    $region3: #{tpu_custom_call.1} parent=1 // pred_check_branch
      %14 = sbr.rel (0) target = $region5
    $region4: #{tpu_custom_call.1} parent=1 // pred_region
      %16 = vsyncadd [#allocation3], 0
      %s18 = sshll.u32 %s0, 4
      %s19 = int_to_ptr.hbm [resolvable:$true] %s18
      %s20 = sshll.u32 [#allocation2], 4
      %s21 = int_to_ptr.vmem [resolvable:$true] %s20
      %23 = dma.hbm_to_vmem [thread:$0]  %s19, 128, %s21, [#allocation3]
    $region5: #{tpu_custom_call.1} parent=1 // pred_fallthru
      _
    // Predicated region
    $region6: #{tpu_custom_call.1} parent=1 // pred_check
      _
    $region7: #{tpu_custom_call.1} parent=1 // pred_check_branch
      %25 = sbr.rel (0) target = $region9
    $region8: #{tpu_custom_call.1} parent=1 // pred_region
      %27 = vsyncadd [#allocation6], 0
      %s28 = sshll.u32 %s1, 4
      %s29 = int_to_ptr.hbm [resolvable:$true] %s28
      %s30 = sshll.u32 [#allocation5], 4
      %s31 = int_to_ptr.vmem [resolvable:$true] %s30
      %36 = dma.hbm_to_vmem [thread:$0]  %s29, 2048, %s31, [#allocation6], 128, 128, 8
    $region9: #{tpu_custom_call.1} parent=1 // pred_fallthru
      _
    // Predicated region
    $region10: #{tpu_custom_call.1} parent=1 // pred_check
      _
    $region11: #{tpu_custom_call.1} parent=1 // pred_check_branch
      %38 = sbr.rel (0) target = $region13
    $region12: #{tpu_custom_call.1} parent=1 // pred_region
      _
    $region13: #{tpu_custom_call.1} parent=1 // pred_fallthru
      _
    // Predicated region
    $region14: #{tpu_custom_call.1} parent=1 // pred_check
      _
    $region15: #{tpu_custom_call.1} parent=1 // pred_check_branch
      %40 = sbr.rel (0) target = $region17
    $region16: #{tpu_custom_call.1} parent=1 // pred_region
      %42 = vsyncadd [#allocation6], 0
      %s43 = sshll.u32 %s3, 4
      %s44 = int_to_ptr.hbm [resolvable:$true] %s43
      %s45 = sshll.u32 [#allocation7], 4
      %s46 = int_to_ptr.vmem [resolvable:$true] %s45
      %51 = dma.hbm_to_vmem [thread:$0]  %s44, 2048, %s46, [#allocation6], 128, 128, 8
    $region17: #{tpu_custom_call.1} parent=1 // pred_fallthru
      _
    // Predicated region
    $region18: #{tpu_custom_call.1} parent=1 // pred_check
      _
    $region19: #{tpu_custom_call.1} parent=1 // pred_check_branch
      %53 = sbr.rel (0) target = $region21
    $region20: #{tpu_custom_call.1} parent=1 // pred_region
      _
    $region21: #{tpu_custom_call.1} parent=1 // pred_fallthru
      _
    // Predicated region
    $region22: #{tpu_custom_call.1} parent=1 // pred_check
      _
    $region23: #{tpu_custom_call.1} parent=1 // pred_check_branch
      %55 = sbr.rel (0) target = $region25
    $region24: #{tpu_custom_call.1} parent=1 // pred_region
      %57 = dma.done [#allocation3], 128
    $region25: #{tpu_custom_call.1} parent=1 // pred_fallthru
      _
    // Predicated region
    $region26: #{tpu_custom_call.1} parent=1 // pred_check
      _
    $region27: #{tpu_custom_call.1} parent=1 // pred_check_branch
      %59 = sbr.rel (0) target = $region29
    $region28: #{tpu_custom_call.1} parent=1 // pred_region
      %61 = dma.done [#allocation6], 2048
    $region29: #{tpu_custom_call.1} parent=1 // pred_fallthru
      _
    // Predicated region
    $region30: #{tpu_custom_call.1} parent=1 // pred_check
      _
    $region31: #{tpu_custom_call.1} parent=1 // pred_check_branch
      %63 = sbr.rel (0) target = $region33
    $region32: #{tpu_custom_call.1} parent=1 // pred_region
      %65 = dma.done [#allocation6], 2048
    $region33: #{tpu_custom_call.1} parent=1 // pred_fallthru
      _
    %v66 = vld [vmem:[#allocation5] sm:$0xff]
    %v67 = vld [vmem:[#allocation5 + $0x8] sm:$0xff]
    %v68 = vld [vmem:[#allocation5 + $0x10] sm:$0xff]
    %v69 = vld [vmem:[#allocation5 + $0x18] sm:$0xff]
    %v70 = vld [vmem:[#allocation5 + $0x20] sm:$0xff]
    %v71 = vld [vmem:[#allocation5 + $0x28] sm:$0xff]
    %v72 = vld [vmem:[#allocation5 + $0x30] sm:$0xff]
    %v73 = vld [vmem:[#allocation5 + $0x38] sm:$0xff]
    %v74 = vld [vmem:[#allocation5 + $0x40] sm:$0xff]
    %v75 = vld [vmem:[#allocation5 + $0x48] sm:$0xff]
    %v76 = vld [vmem:[#allocation5 + $0x50] sm:$0xff]
    %v77 = vld [vmem:[#allocation5 + $0x58] sm:$0xff]
    %v78 = vld [vmem:[#allocation5 + $0x60] sm:$0xff]
    %v79 = vld [vmem:[#allocation5 + $0x68] sm:$0xff]
    %v80 = vld [vmem:[#allocation5 + $0x70] sm:$0xff]
    %v81 = vld [vmem:[#allocation5 + $0x78] sm:$0xff]
    %v82 = vld [vmem:[#allocation7] sm:$0xff]
    %v83 = vld [vmem:[#allocation7 + $0x8] sm:$0xff]
    %v84 = vld [vmem:[#allocation7 + $0x10] sm:$0xff]
    %v85 = vld [vmem:[#allocation7 + $0x18] sm:$0xff]
    %v86 = vld [vmem:[#allocation7 + $0x20] sm:$0xff]
    %v87 = vld [vmem:[#allocation7 + $0x28] sm:$0xff]
    %v88 = vld [vmem:[#allocation7 + $0x30] sm:$0xff]
    %v89 = vld [vmem:[#allocation7 + $0x38] sm:$0xff]
    %v90 = vld [vmem:[#allocation7 + $0x40] sm:$0xff]
    %v91 = vld [vmem:[#allocation7 + $0x48] sm:$0xff]
    %v92 = vld [vmem:[#allocation7 + $0x50] sm:$0xff]
    %v93 = vld [vmem:[#allocation7 + $0x58] sm:$0xff]
    %v94 = vld [vmem:[#allocation7 + $0x60] sm:$0xff]
    %v95 = vld [vmem:[#allocation7 + $0x68] sm:$0xff]
    %v96 = vld [vmem:[#allocation7 + $0x70] sm:$0xff]
    %v97 = vld [vmem:[#allocation7 + $0x78] sm:$0xff]
    %v98 = vld [vmem:[%s2] sm:$0x1]
    %v99 = vld [vmem:[%s4] sm:$0x1]
    %v100 = vld [vmem:[#allocation2] sm:$0xff]
    %v102 = vperm.slane %v98, 0
    %104 = vmatpush.msra.mxu0 %v81
    %105 = vmatpush.msra.mxu0 %v80
    %106 = vmatpush.msra.mxu0 %v79
    %107 = vmatpush.msra.mxu0 %v78
    %108 = vmatpush.msra.mxu0 %v77
    %109 = vmatpush.msra.mxu0 %v76
    %110 = vmatpush.msra.mxu0 %v75
    %111 = vmatpush.msra.mxu0 %v74
    %112 = vmatpush.msra.mxu0 %v73
    %113 = vmatpush.msra.mxu0 %v72
    %114 = vmatpush.msra.mxu0 %v71
    %115 = vmatpush.msra.mxu0 %v70
    %116 = vmatpush.msra.mxu0 %v69
    %117 = vmatpush.msra.mxu0 %v68
    %118 = vmatpush.msra.mxu0 %v67
    %119 = vmatpush.msra.mxu0 %v66
    %120 = vmatmul.f32.gmra.mxu0 %v100
    %v121 = vpop.f32.mrf.mxu0
    %v122 = vadd.f32 %v102, %v121
    %123 = vdwg.mxu0
    %v124 = vtanh.pop %v122
    %v126 = vperm.slane %v99, 0
    %128 = vmatpush.msra.mxu0 %v97
    %129 = vmatpush.msra.mxu0 %v96
    %130 = vmatpush.msra.mxu0 %v95
    %131 = vmatpush.msra.mxu0 %v94
    %132 = vmatpush.msra.mxu0 %v93
    %133 = vmatpush.msra.mxu0 %v92
    %134 = vmatpush.msra.mxu0 %v91
    %135 = vmatpush.msra.mxu0 %v90
    %136 = vmatpush.msra.mxu0 %v89
    %137 = vmatpush.msra.mxu0 %v88
    %138 = vmatpush.msra.mxu0 %v87
    %139 = vmatpush.msra.mxu0 %v86
    %140 = vmatpush.msra.mxu0 %v85
    %141 = vmatpush.msra.mxu0 %v84
    %142 = vmatpush.msra.mxu0 %v83
    %143 = vmatpush.msra.mxu0 %v82
    %144 = vmatmul.f32.gmra.mxu0 %v124
    %v145 = vpop.f32.mrf.mxu0
    %v146 = vadd.f32 %v126, %v145
    %147 = vdwg.mxu0
    %148 = vst [vmem:[#allocation8] sm:$0xff] %v146
    // Predicated region
    $region34: #{tpu_custom_call.1} parent=1 // pred_check
      _
    $region35: #{tpu_custom_call.1} parent=1 // pred_check_branch
      %150 = sbr.rel (0) target = $region37
    $region36: #{tpu_custom_call.1} parent=1 // pred_region
      %152 = vsyncadd [#allocation4], 0
      %s154 = sshll.u32 [#allocation8], 4
      %s155 = int_to_ptr.vmem [resolvable:$true] %s154
      %s156 = sshll.u32 %s5, 4
      %s157 = int_to_ptr.hbm [resolvable:$true] %s156
      %159 = dma.vmem_to_hbm [thread:$0]  %s155, 128, %s157, [#allocation4]
    $region37: #{tpu_custom_call.1} parent=1 // pred_fallthru
      _
    // Predicated region
    $region38: #{tpu_custom_call.1} parent=1 // pred_check
      _
    $region39: #{tpu_custom_call.1} parent=1 // pred_check_branch
      %161 = sbr.rel (0) target = $region41
    $region40: #{tpu_custom_call.1} parent=1 // pred_region
      %163 = dma.done [#allocation4], 128
    $region41: #{tpu_custom_call.1} parent=1 // pred_fallthru
      _
    %164 = vsyncpa [#allocation3], 1
    %165 = vsyncpa [#allocation6], 1
    %166 = vsyncpa [#allocation4], 1

</llo_original>
